<compile_context>
chip_gen: v5e
topology: v5e:2x2
jax: 0.10.0
libtpu: 0.0.40
codegen_flags: <defaults>
</compile_context>

<pallas_src>
import functools

import jax
import jax.numpy as jnp
from jax.experimental import pallas as pl
from jax.experimental.pallas import tpu as pltpu

LOG_STD_MAX = 2.0
LOG_STD_MIN = -5.0
_LS_SCALE = 0.5 * (LOG_STD_MAX - LOG_STD_MIN)       # 3.5
_LS_SHIFT = LOG_STD_MIN + _LS_SCALE                 # -1.5  (ls = tanh*S + (MIN+S))


def _round_up(x, m):
    return ((x + m - 1) // m) * m


def _cdiv(a, b):
    return -(-a // b)


def _choose_tile_b(batch):
    """Batch tile size.

    <= 2048 rows: single grid step (per-step overhead negligible).
    Larger: aim for ~4 grid steps (splittable across v7x's 2 TensorCores) with a
    2048-row floor and 8192-row cap, so per-step overhead stays well amortized
    while the tile footprint remains a few MiB even on v7x's 64 MiB VMEM.
    """
    bp = _round_up(batch, 8)
    if bp <= 2048:
        return bp
    tile = _round_up(_cdiv(bp, 4), 8)
    return max(2048, min(tile, 8192))


def _has_bf16_vpu():
    """v5e has no bf16 VPU -> keep the elementwise chain in f32 there."""
    try:
        kind = jax.devices()[0].device_kind.lower()
    except Exception:
        return True
    return not any(t in kind for t in ("v5 lite", "v5e", "v5lite"))


def actor_kernel(x_ref, w0_ref, b0_ref, w1_ref, b1_ref, wh_ref, bh_ref, out_ref):
    act_dim = out_ref.shape[-1] // 2
    ew_dtype = b0_ref.dtype          # bf16 on v6e/v7x, f32 on v5e (set by wrapper)

    # x may arrive as f32 (cast here) or already bf16 (producer-side cast on v5e).
    x = x_ref[...]
    if x.dtype != jnp.bfloat16:
        x = x.astype(jnp.bfloat16)

    # input_layer: Linear + ReLU  (bf16 MXU, f32 accumulate, ew_dtype elementwise)
    h = jnp.dot(x, w0_ref[...], preferred_element_type=jnp.float32).astype(ew_dtype)
    h = jnp.maximum(h + b0_ref[...], 0).astype(jnp.bfloat16)

    # feature_network: Linear + ReLU
    h = jnp.dot(h, w1_ref[...], preferred_element_type=jnp.float32).astype(ew_dtype)
    h = jnp.maximum(h + b1_ref[...], 0).astype(jnp.bfloat16)

    # fused heads: [fc_mean | fc_logstd] in one (hidden, 2*act_dim) matmul, f32 tail
    heads = jnp.dot(h, wh_ref[...], preferred_element_type=jnp.float32) + bh_ref[...]

    # tanh (EUP) + FMA rescale on the whole fused head, then blend the mean
    # columns back in with a lane mask -- no sub-128-lane column slices.
    ls_full = jnp.tanh(heads) * _LS_SCALE + _LS_SHIFT
    col = jax.lax.broadcasted_iota(jnp.int32, heads.shape, 1)
    out = jnp.where(col < act_dim, heads, ls_full)

    out_ref[...] = out.astype(out_ref.dtype)


@functools.partial(jax.jit, static_argnames=("tile_b",))
def actor_forward(x, params, tile_b=None):
    """x: (B, obs_dim) f32 (or bf16). params: dict from pack_kernel_params."""
    B, obs_dim = x.shape
    hidden = params["w1"].shape[0]
    two_act = params["wh"].shape[1]
    act_dim = two_act // 2

    if tile_b is None:
        tile_b = _choose_tile_b(B)
    tile_b = max(8, _round_up(tile_b, 8))
    Bp = _round_up(B, tile_b)
    if Bp != B:
        x = jnp.pad(x, ((0, Bp - B), (0, 0)))
    grid = (Bp // tile_b,)

    # Weights/biases stay VMEM-resident across grid steps (constant index_map).
    def const_spec(shape):
        return pl.BlockSpec(shape, lambda i: (0, 0))

    in_specs = [
        pl.BlockSpec((tile_b, obs_dim), lambda i: (i, 0)),   # x tile
        const_spec((obs_dim, hidden)),                       # w0
        const_spec((1, hidden)),                             # b0
        const_spec((hidden, hidden)),                        # w1
        const_spec((1, hidden)),                             # b1
        const_spec((hidden, two_act)),                       # wh (fused heads)
        const_spec((1, two_act)),                            # bh
    ]
    out_specs = pl.BlockSpec((tile_b, two_act), lambda i: (i, 0))  # [mean | log_std]

    flops = 2 * Bp * (obs_dim * hidden + hidden * hidden + hidden * two_act)
    bytes_accessed = (
        x.size * x.dtype.itemsize
        + sum(int(params[k].size) * params[k].dtype.itemsize
              for k in ("w0", "b0", "w1", "b1", "wh", "bh"))
        + Bp * two_act * 4
    )
    cost = pl.CostEstimate(flops=flops,
                           transcendentals=Bp * two_act,
                           bytes_accessed=bytes_accessed)

    out = pl.pallas_call(
        actor_kernel,
        out_shape=jax.ShapeDtypeStruct((Bp, two_act), jnp.float32),
        grid=grid,
        in_specs=in_specs,
        out_specs=out_specs,
        compiler_params=pltpu.CompilerParams(
            dimension_semantics=("parallel",)),   # megacore sharding on v7x
        cost_estimate=cost,
    )(x, params["w0"], params["b0"], params["w1"], params["b1"],
      params["wh"], params["bh"])

    return out[:B, :act_dim], out[:B, act_dim:]


def init_params_f32(key, obs_dim, hidden, act_dim):
    """PyTorch-style Linear init (U(-1/sqrt(fan_in), 1/sqrt(fan_in))), f32."""
    ks = jax.random.split(key, 8)

    def lin(kw, kb, fan_in, fan_out):
        bound = 1.0 / float(fan_in) ** 0.5
        w = jax.random.uniform(kw, (fan_in, fan_out), jnp.float32, -bound, bound)
        b = jax.random.uniform(kb, (1, fan_out), jnp.float32, -bound, bound)
        return w, b

    w0, b0 = lin(ks[0], ks[1], obs_dim, hidden)
    w1, b1 = lin(ks[2], ks[3], hidden, hidden)
    wm, bm = lin(ks[4], ks[5], hidden, act_dim)
    ws, bs = lin(ks[6], ks[7], hidden, act_dim)
    return dict(w0=w0, b0=b0, w1=w1, b1=b1, wm=wm, bm=bm, ws=ws, bs=bs)


def pack_kernel_params(p, elementwise_bf16=True):
    """Fuse heads, cast weights to bf16; hidden-layer biases follow the
    elementwise dtype (bf16 on v6e/v7x, f32 on v5e). Head bias stays f32."""
    bias_dt = jnp.bfloat16 if elementwise_bf16 else jnp.float32
    return dict(
        w0=p["w0"].astype(jnp.bfloat16), b0=p["b0"].astype(bias_dt),
        w1=p["w1"].astype(jnp.bfloat16), b1=p["b1"].astype(bias_dt),
        wh=jnp.concatenate([p["wm"], p["ws"]], axis=1).astype(jnp.bfloat16),
        bh=jnp.concatenate([p["bm"], p["bs"]], axis=1),
    )


def reference_forward(x, p):
    """Pure-JAX f32 reference matching the PyTorch module."""
    h = jnp.maximum(x @ p["w0"] + p["b0"], 0.0)
    h = jnp.maximum(h @ p["w1"] + p["b1"], 0.0)
    mean = h @ p["wm"] + p["bm"]
    ls = jnp.tanh(h @ p["ws"] + p["bs"])
    ls = LOG_STD_MIN + 0.5 * (LOG_STD_MAX - LOG_STD_MIN) * (ls + 1.0)
    return mean, ls


if __name__ == "__main__":
    key = jax.random.PRNGKey(0)
    k_x, k_p = jax.random.split(key)

    batch = 8
    obs_dim = 16      # flattened observation size
    hidden = 64       # inter_layers_list = [64, 64]
    act_dim = 4       # flattened action size

    x = jax.random.normal(k_x, (batch, obs_dim), jnp.float32)
    params_f32 = init_params_f32(k_p, obs_dim, hidden, act_dim)
    params = pack_kernel_params(params_f32, elementwise_bf16=_has_bf16_vpu())

    mean, log_std = actor_forward(x, params)
    jax.block_until_ready((mean, log_std))

    # Correctness check vs. f32 reference (bf16 matmuls -> looser tolerance).
    mean_ref, ls_ref = reference_forward(x, params_f32)
    assert mean.shape == (batch, act_dim) and log_std.shape == (batch, act_dim)
    assert jnp.allclose(mean, mean_ref, atol=5e-2, rtol=5e-2), (
        float(jnp.max(jnp.abs(mean - mean_ref))))
    assert jnp.allclose(log_std, ls_ref, atol=5e-2, rtol=5e-2), (
        float(jnp.max(jnp.abs(log_std - ls_ref))))
    # log_std must lie inside [LOG_STD_MIN, LOG_STD_MAX] (f32 tanh tail -> tight bound ok)
    assert bool(jnp.all(log_std >= LOG_STD_MIN - 1e-3))
    assert bool(jnp.all(log_std <= LOG_STD_MAX + 1e-3))

    print("KERNEL_OK")
</pallas_src>

<mosaic_0001>
module attributes {stable_mosaic.version = 11 : i64} {
  func.func @actor_kernel(%arg0: i32, %arg1: memref<8x16xf32, #tpu.memory_space<vmem>>, %arg2: memref<16x64xbf16, #tpu.memory_space<vmem>>, %arg3: memref<1x64xbf16, #tpu.memory_space<vmem>>, %arg4: memref<64x64xbf16, #tpu.memory_space<vmem>>, %arg5: memref<1x64xbf16, #tpu.memory_space<vmem>>, %arg6: memref<64x8xbf16, #tpu.memory_space<vmem>>, %arg7: memref<1x8xf32, #tpu.memory_space<vmem>>, %arg8: memref<8x8xf32, #tpu.memory_space<vmem>>) attributes {dimension_semantics = [#tpu.dimension_semantics<parallel>], iteration_bounds = array<i64: 1>, scalar_prefetch = 0 : i64, scratch_operands = 0 : i64, tpu.core_type = #tpu.core_type<tc>, window_params = [{transform_indices = @transform_0, window_bounds = array<i64: 8, 16>}, {pipeline_mode = #tpu.pipeline_mode<synchronous>, transform_indices = @transform_1, window_bounds = array<i64: 16, 64>}, {pipeline_mode = #tpu.pipeline_mode<synchronous>, transform_indices = @transform_2, window_bounds = array<i64: 1, 64>}, {pipeline_mode = #tpu.pipeline_mode<synchronous>, transform_indices = @transform_3, window_bounds = array<i64: 64, 64>}, {pipeline_mode = #tpu.pipeline_mode<synchronous>, transform_indices = @transform_4, window_bounds = array<i64: 1, 64>}, {pipeline_mode = #tpu.pipeline_mode<synchronous>, transform_indices = @transform_5, window_bounds = array<i64: 64, 8>}, {pipeline_mode = #tpu.pipeline_mode<synchronous>, transform_indices = @transform_6, window_bounds = array<i64: 1, 8>}, {transform_indices = @transform_7, window_bounds = array<i64: 8, 8>}]} {
    %c0 = arith.constant 0 : index
    %c0_0 = arith.constant 0 : index
    %0 = vector.load %arg1[%c0, %c0_0] : memref<8x16xf32, #tpu.memory_space<vmem>>, vector<8x16xf32>
    %1 = arith.truncf %0 : vector<8x16xf32> to vector<8x16xbf16>
    %c0_1 = arith.constant 0 : index
    %c0_2 = arith.constant 0 : index
    %2 = vector.load %arg2[%c0_1, %c0_2] : memref<16x64xbf16, #tpu.memory_space<vmem>>, vector<16x64xbf16>
    %cst = arith.constant dense<0.000000e+00> : vector<8x64xf32>
    %3 = tpu.matmul %1, %2, %cst {dimension_numbers = #tpu.dot_dimension_numbers<[1], [0], [0], [1], [0, 0, 1, 1], [], []>} : vector<8x16xbf16>, vector<16x64xbf16>, vector<8x64xf32> -> vector<8x64xf32>
    %4 = arith.truncf %3 : vector<8x64xf32> to vector<8x64xbf16>
    %c0_3 = arith.constant 0 : index
    %c0_4 = arith.constant 0 : index
    %5 = vector.load %arg3[%c0_3, %c0_4] : memref<1x64xbf16, #tpu.memory_space<vmem>>, vector<1x64xbf16>
    %6 = vector.broadcast %5 : vector<1x64xbf16> to vector<8x64xbf16>
    %7 = arith.addf %4, %6 : vector<8x64xbf16>
    %cst_5 = arith.constant 0.000000e+00 : bf16
    %8 = vector.broadcast %cst_5 : bf16 to vector<8x64xbf16>
    %9 = arith.maximumf %7, %8 : vector<8x64xbf16>
    %c0_6 = arith.constant 0 : index
    %c0_7 = arith.constant 0 : index
    %10 = vector.load %arg4[%c0_6, %c0_7] : memref<64x64xbf16, #tpu.memory_space<vmem>>, vector<64x64xbf16>
    %cst_8 = arith.constant dense<0.000000e+00> : vector<8x64xf32>
    %11 = tpu.matmul %9, %10, %cst_8 {dimension_numbers = #tpu.dot_dimension_numbers<[1], [0], [0], [1], [0, 0, 1, 1], [], []>} : vector<8x64xbf16>, vector<64x64xbf16>, vector<8x64xf32> -> vector<8x64xf32>
    %12 = arith.truncf %11 : vector<8x64xf32> to vector<8x64xbf16>
    %c0_9 = arith.constant 0 : index
    %c0_10 = arith.constant 0 : index
    %13 = vector.load %arg5[%c0_9, %c0_10] : memref<1x64xbf16, #tpu.memory_space<vmem>>, vector<1x64xbf16>
    %14 = vector.broadcast %13 : vector<1x64xbf16> to vector<8x64xbf16>
    %15 = arith.addf %12, %14 : vector<8x64xbf16>
    %cst_11 = arith.constant 0.000000e+00 : bf16
    %16 = vector.broadcast %cst_11 : bf16 to vector<8x64xbf16>
    %17 = arith.maximumf %15, %16 : vector<8x64xbf16>
    %c0_12 = arith.constant 0 : index
    %c0_13 = arith.constant 0 : index
    %18 = vector.load %arg6[%c0_12, %c0_13] : memref<64x8xbf16, #tpu.memory_space<vmem>>, vector<64x8xbf16>
    %cst_14 = arith.constant dense<0.000000e+00> : vector<8x8xf32>
    %19 = tpu.matmul %17, %18, %cst_14 {dimension_numbers = #tpu.dot_dimension_numbers<[1], [0], [0], [1], [0, 0, 1, 1], [], []>} : vector<8x64xbf16>, vector<64x8xbf16>, vector<8x8xf32> -> vector<8x8xf32>
    %c0_15 = arith.constant 0 : index
    %c0_16 = arith.constant 0 : index
    %20 = vector.load %arg7[%c0_15, %c0_16] : memref<1x8xf32, #tpu.memory_space<vmem>>, vector<1x8xf32>
    %21 = vector.broadcast %20 : vector<1x8xf32> to vector<8x8xf32>
    %22 = arith.addf %19, %21 : vector<8x8xf32>
    %23 = math.tanh %22 : vector<8x8xf32>
    %cst_17 = arith.constant 3.500000e+00 : f32
    %24 = vector.broadcast %cst_17 : f32 to vector<8x8xf32>
    %25 = arith.mulf %23, %24 : vector<8x8xf32>
    %cst_18 = arith.constant -1.500000e+00 : f32
    %26 = vector.broadcast %cst_18 : f32 to vector<8x8xf32>
    %27 = arith.addf %25, %26 : vector<8x8xf32>
    %28 = tpu.iota {dimensions = array<i32: 1>} : vector<8x8xi32>
    %c4_i32 = arith.constant 4 : i32
    %29 = vector.broadcast %c4_i32 : i32 to vector<8x8xi32>
    %30 = arith.cmpi slt, %28, %29 : vector<8x8xi32>
    %31 = arith.select %30, %22, %27 : vector<8x8xi1>, vector<8x8xf32>
    %c0_19 = arith.constant 0 : index
    %c0_20 = arith.constant 0 : index
    %32 = vector.load %arg8[%c0_19, %c0_20] : memref<8x8xf32, #tpu.memory_space<vmem>>, vector<8x8xf32>
    tpu.vector_store %arg8[%c0_19, %c0_20], %31 {strides = array<i32>} : memref<8x8xf32, #tpu.memory_space<vmem>>, vector<8x8xf32>,
    return
  }
  func.func @transform_0(%arg0: i32) -> (i32, i32) {
    %c0_i32 = arith.constant 0 : i32
    %c0_i32_0 = arith.constant 0 : i32
    return %arg0, %c0_i32 : i32, i32
  }
  func.func @transform_1(%arg0: i32) -> (i32, i32) {
    %c0_i32 = arith.constant 0 : i32
    %c0_i32_0 = arith.constant 0 : i32
    %c0_i32_1 = arith.constant 0 : i32
    return %c0_i32, %c0_i32_0 : i32, i32
  }
  func.func @transform_2(%arg0: i32) -> (i32, i32) {
    %c0_i32 = arith.constant 0 : i32
    %c0_i32_0 = arith.constant 0 : i32
    %c0_i32_1 = arith.constant 0 : i32
    return %c0_i32, %c0_i32_0 : i32, i32
  }
  func.func @transform_3(%arg0: i32) -> (i32, i32) {
    %c0_i32 = arith.constant 0 : i32
    %c0_i32_0 = arith.constant 0 : i32
    %c0_i32_1 = arith.constant 0 : i32
    return %c0_i32, %c0_i32_0 : i32, i32
  }
  func.func @transform_4(%arg0: i32) -> (i32, i32) {
    %c0_i32 = arith.constant 0 : i32
    %c0_i32_0 = arith.constant 0 : i32
    %c0_i32_1 = arith.constant 0 : i32
    return %c0_i32, %c0_i32_0 : i32, i32
  }
  func.func @transform_5(%arg0: i32) -> (i32, i32) {
    %c0_i32 = arith.constant 0 : i32
    %c0_i32_0 = arith.constant 0 : i32
    %c0_i32_1 = arith.constant 0 : i32
    return %c0_i32, %c0_i32_0 : i32, i32
  }
  func.func @transform_6(%arg0: i32) -> (i32, i32) {
    %c0_i32 = arith.constant 0 : i32
    %c0_i32_0 = arith.constant 0 : i32
    %c0_i32_1 = arith.constant 0 : i32
    return %c0_i32, %c0_i32_0 : i32, i32
  }
  func.func @transform_7(%arg0: i32) -> (i32, i32) {
    %c0_i32 = arith.constant 0 : i32
    %c0_i32_0 = arith.constant 0 : i32
    return %arg0, %c0_i32 : i32, i32
  }
}

</mosaic_0001>

<llo_original>
// kernel: actor_forward.1
$region0: #{actor_forward.1}
  #allocation0 [shape = 'u32[]', space=smem, size = 0x4, offset = 0x4, fixed_abs, tag = 'smem constant byte address 0x4 - core index']
  #allocation1 [shape = 'u32[72,128]{1,0:T(1,128)}', space=vmem, size = 0x9000, scoped, tag = 'internal scratch']
  %s0 = inlined_call_operand.vmem [shape: f32[8,16], index: 0, kind: input, shape index: {}]
  %s1 = inlined_call_operand.hbm [shape: bf16[16,64], index: 1, kind: input, shape index: {}]
  %s2 = inlined_call_operand.hbm [shape: bf16[1,64], index: 2, kind: input, shape index: {}]
  %s3 = inlined_call_operand.vmem [shape: bf16[64,64], index: 3, kind: input, shape index: {}]
  %s4 = inlined_call_operand.hbm [shape: bf16[1,64], index: 4, kind: input, shape index: {}]
  %s5 = inlined_call_operand.vmem [shape: bf16[64,8], index: 5, kind: input, shape index: {}]
  %s6 = inlined_call_operand.hbm [shape: f32[1,8], index: 6, kind: input, shape index: {}]
  %s7 = inlined_call_operand.vmem [shape: f32[8,8], index: 7, kind: output, shape index: {}]
  %s8 = sld [smem:[#allocation0]]
  $region54: #{actor_forward.1} parent=0
    _
  %s10 = ssub.s32 1, %s8
  %s11 = scalar_select 0, %s10, %s8
  $region1: #{actor_forward.1} parent=0
    #allocation2 [shape = 'u8[4096]{0}', space=vmem, size = 0x1000, scoped, tag = 'input window, operand 1, single buffered']
    #allocation3 [shape = 's32[1]{0}', space=sflag, size = 0x4, scoped, tag = 'scoped memory for actor_forward.1']
    #allocation4 [shape = 'u8[512]{0}', space=vmem, size = 0x400, scoped, tag = 'input window, operand 2, single buffered']
    #allocation5 [shape = 's32[1]{0}', space=sflag, size = 0x4, scoped, tag = 'scoped memory for actor_forward.1']
    #allocation6 [shape = 'u8[512]{0}', space=vmem, size = 0x400, scoped, tag = 'input window, operand 4, single buffered']
    #allocation7 [shape = 'u8[512]{0}', space=vmem, size = 0x400, scoped, tag = 'input window, operand 6, single buffered']
    #allocation8 [shape = 's32[1]{0}', space=sflag, size = 0x4, scoped, tag = 'scoped memory for actor_forward.1']
    %12 = vsyncpa [#allocation3], 0
    %13 = vsyncpa [#allocation5], 0
    %14 = vsyncpa [#allocation8], 0
    // Predicated region
    $region2: #{actor_forward.1} parent=1 // pred_check
      _
    $region3: #{actor_forward.1} parent=1 // pred_check_branch
      %16 = sbr.rel (0) target = $region5
    $region4: #{actor_forward.1} parent=1 // pred_region
      _
    $region5: #{actor_forward.1} parent=1 // pred_fallthru
      _
    // Predicated region
    $region6: #{actor_forward.1} parent=1 // pred_check
      _
    $region7: #{actor_forward.1} parent=1 // pred_check_branch
      %18 = sbr.rel (0) target = $region9
    $region8: #{actor_forward.1} parent=1 // pred_region
      %20 = vsyncadd [#allocation3], 0
      %s21 = sshll.u32 %s1, 4
      %s22 = int_to_ptr.hbm [resolvable:$true] %s21
      %s23 = sshll.u32 [#allocation2], 4
      %s24 = int_to_ptr.vmem [resolvable:$true] %s23
      %29 = dma.hbm_to_vmem [thread:$0]  %s22, 128, %s24, [#allocation3], 64, 64, 4
    $region9: #{actor_forward.1} parent=1 // pred_fallthru
      _
    // Predicated region
    $region10: #{actor_forward.1} parent=1 // pred_check
      _
    $region11: #{actor_forward.1} parent=1 // pred_check_branch
      %31 = sbr.rel (0) target = $region13
    $region12: #{actor_forward.1} parent=1 // pred_region
      %33 = vsyncadd [#allocation5], 0
      %s35 = sshll.u32 %s2, 4
      %s36 = int_to_ptr.hbm [resolvable:$true] %s35
      %s37 = sshll.u32 [#allocation4], 4
      %s38 = int_to_ptr.vmem [resolvable:$true] %s37
      %40 = dma.hbm_to_vmem [thread:$0]  %s36, 16, %s38, [#allocation5]
    $region13: #{actor_forward.1} parent=1 // pred_fallthru
      _
    // Predicated region
    $region14: #{actor_forward.1} parent=1 // pred_check
      _
    $region15: #{actor_forward.1} parent=1 // pred_check_branch
      %42 = sbr.rel (0) target = $region17
    $region16: #{actor_forward.1} parent=1 // pred_region
      _
    $region17: #{actor_forward.1} parent=1 // pred_fallthru
      _
    // Predicated region
    $region18: #{actor_forward.1} parent=1 // pred_check
      _
    $region19: #{actor_forward.1} parent=1 // pred_check_branch
      %44 = sbr.rel (0) target = $region21
    $region20: #{actor_forward.1} parent=1 // pred_region
      %46 = vsyncadd [#allocation5], 0
      %s48 = sshll.u32 %s4, 4
      %s49 = int_to_ptr.hbm [resolvable:$true] %s48
      %s50 = sshll.u32 [#allocation6], 4
      %s51 = int_to_ptr.vmem [resolvable:$true] %s50
      %53 = dma.hbm_to_vmem [thread:$0]  %s49, 16, %s51, [#allocation5]
    $region21: #{actor_forward.1} parent=1 // pred_fallthru
      _
    // Predicated region
    $region22: #{actor_forward.1} parent=1 // pred_check
      _
    $region23: #{actor_forward.1} parent=1 // pred_check_branch
      %55 = sbr.rel (0) target = $region25
    $region24: #{actor_forward.1} parent=1 // pred_region
      _
    $region25: #{actor_forward.1} parent=1 // pred_fallthru
      _
    // Predicated region
    $region26: #{actor_forward.1} parent=1 // pred_check
      _
    $region27: #{actor_forward.1} parent=1 // pred_check_branch
      %57 = sbr.rel (0) target = $region29
    $region28: #{actor_forward.1} parent=1 // pred_region
      %59 = vsyncadd [#allocation8], 0
      %s61 = sshll.u32 %s6, 4
      %s62 = int_to_ptr.hbm [resolvable:$true] %s61
      %s63 = sshll.u32 [#allocation7], 4
      %s64 = int_to_ptr.vmem [resolvable:$true] %s63
      %66 = dma.hbm_to_vmem [thread:$0]  %s62, 16, %s64, [#allocation8]
    $region29: #{actor_forward.1} parent=1 // pred_fallthru
      _
    // Predicated region
    $region30: #{actor_forward.1} parent=1 // pred_check
      _
    $region31: #{actor_forward.1} parent=1 // pred_check_branch
      %68 = sbr.rel (0) target = $region33
    $region32: #{actor_forward.1} parent=1 // pred_region
      %70 = dma.done [#allocation3], 128
    $region33: #{actor_forward.1} parent=1 // pred_fallthru
      _
    // Predicated region
    $region34: #{actor_forward.1} parent=1 // pred_check
      _
    $region35: #{actor_forward.1} parent=1 // pred_check_branch
      %72 = sbr.rel (0) target = $region37
    $region36: #{actor_forward.1} parent=1 // pred_region
      %74 = dma.done [#allocation5], 16
    $region37: #{actor_forward.1} parent=1 // pred_fallthru
      _
    // Predicated region
    $region38: #{actor_forward.1} parent=1 // pred_check
      _
    $region39: #{actor_forward.1} parent=1 // pred_check_branch
      %76 = sbr.rel (0) target = $region41
    $region40: #{actor_forward.1} parent=1 // pred_region
      %78 = dma.done [#allocation5], 16
    $region41: #{actor_forward.1} parent=1 // pred_fallthru
      _
    // Predicated region
    $region42: #{actor_forward.1} parent=1 // pred_check
      _
    $region43: #{actor_forward.1} parent=1 // pred_check_branch
      %80 = sbr.rel (0) target = $region45
    $region44: #{actor_forward.1} parent=1 // pred_region
      %82 = dma.done [#allocation8], 16
    $region45: #{actor_forward.1} parent=1 // pred_fallthru
      _
    %v84 = vld [vmem:[%s0] sm:$0xff]
    %v85 = vpack.c.bf16 %v84, %v84
    %v86 = vld [vmem:[#allocation2] sm:$0xf]
    %v87 = vld [vmem:[#allocation2 + $0x4] sm:$0xf]
    %v90 = vunpack.c.l.b16 %v86
    %v91 = vunpack.c.l.b16 %v87
    %v92 = vpack.c.b16 %v91, %v90
    %vm94 = vcmask 130048
    %v96 = vsel %vm94, %v85, 0
    %98 = vmatpush.bf16.msra.mxu0 0
    %99 = vmatpush.bf16.msra.mxu0 0
    %100 = vmatpush.bf16.msra.mxu0 0
    %101 = vmatpush.bf16.msra.mxu0 0
    %102 = vmatpush.bf16.msra.mxu0 0
    %103 = vmatpush.bf16.msra.mxu0 0
    %104 = vmatpush.bf16.msra.mxu0 0
    %105 = vmatpush.bf16.msra.mxu0 %v92
    %106 = vmatmul.bf16.gmra.mxu0 %v96
    %v107 = vpop.f32.mrf.mxu0
    %v108 = vadd.f32 0.0, %v107
    %v109 = vpop.f32.mrf.mxu0
    %110 = vdwg.mxu0
    %v111 = vpack.c.bf16 %v108, %v108
    %v112 = vld [vmem:[#allocation4] sm:$0x1]
    %v114 = vpack.i.b16 %v112, %v112
    %v116 = vperm.slane %v114, 0
    %v117 = vunpack.c.l.bf16 %v111
    %v118 = vunpack.c.l.bf16 %v116
    %v119 = vadd.f32 %v117, %v118
    %v120 = vpack.c.bf16 %v119, %v119
    %v121 = vunpack.c.l.bf16 %v120
    %v122 = vmax.f32 %v121, 0.0
    %v123 = vpack.c.bf16 %v122, %v122
    %v124 = vld [vmem:[%s3] sm:$0xf]
    %v125 = vld [vmem:[%s3 + $0x4] sm:$0xf]
    %v126 = vld [vmem:[%s3 + $0x8] sm:$0xf]
    %v127 = vld [vmem:[%s3 + $0xc] sm:$0xf]
    %v128 = vld [vmem:[%s3 + $0x10] sm:$0xf]
    %v129 = vld [vmem:[%s3 + $0x14] sm:$0xf]
    %v130 = vld [vmem:[%s3 + $0x18] sm:$0xf]
    %v131 = vld [vmem:[%s3 + $0x1c] sm:$0xf]
    %v140 = vunpack.c.l.b16 %v124
    %v141 = vunpack.c.l.b16 %v125
    %v142 = vunpack.c.l.b16 %v126
    %v143 = vunpack.c.l.b16 %v127
    %v144 = vunpack.c.l.b16 %v128
    %v145 = vunpack.c.l.b16 %v129
    %v146 = vunpack.c.l.b16 %v130
    %v147 = vunpack.c.l.b16 %v131
    %v148 = vpack.c.b16 %v141, %v140
    %v149 = vpack.c.b16 %v143, %v142
    %v150 = vpack.c.b16 %v145, %v144
    %v151 = vpack.c.b16 %v147, %v146
    %vm156 = vcmask 523264
    %v158 = vsel %vm156, %v123, 0
    %160 = vmatpush.bf16.msra.mxu0 0
    %161 = vmatpush.bf16.msra.mxu0 0
    %162 = vmatpush.bf16.msra.mxu0 0
    %163 = vmatpush.bf16.msra.mxu0 0
    %164 = vmatpush.bf16.msra.mxu0 %v151
    %165 = vmatpush.bf16.msra.mxu0 %v150
    %166 = vmatpush.bf16.msra.mxu0 %v149
    %167 = vmatpush.bf16.msra.mxu0 %v148
    %168 = vmatmul.bf16.gmra.mxu0 %v158
    %v169 = vpop.f32.mrf.mxu0
    %v170 = vadd.f32 0.0, %v169
    %v171 = vpop.f32.mrf.mxu0
    %172 = vdwg.mxu0
    %v173 = vpack.c.bf16 %v170, %v170
    %v174 = vld [vmem:[#allocation6] sm:$0x1]
    %v176 = vpack.i.b16 %v174, %v174
    %v178 = vperm.slane %v176, 0
    %v179 = vunpack.c.l.bf16 %v173
    %v180 = vunpack.c.l.bf16 %v178
    %v181 = vadd.f32 %v179, %v180
    %v182 = vpack.c.bf16 %v181, %v181
    %v183 = vunpack.c.l.bf16 %v182
    %v184 = vmax.f32 %v183, 0.0
    %v185 = vpack.c.bf16 %v184, %v184
    %v186 = vld [vmem:[%s5] sm:$0xf]
    %v187 = vld [vmem:[%s5 + $0x4] sm:$0xf]
    %v188 = vld [vmem:[%s5 + $0x8] sm:$0xf]
    %v189 = vld [vmem:[%s5 + $0xc] sm:$0xf]
    %v190 = vld [vmem:[%s5 + $0x10] sm:$0xf]
    %v191 = vld [vmem:[%s5 + $0x14] sm:$0xf]
    %v192 = vld [vmem:[%s5 + $0x18] sm:$0xf]
    %v193 = vld [vmem:[%s5 + $0x1c] sm:$0xf]
    %v194 = vld [vmem:[#allocation7] sm:$0x1]
    %v196 = vperm.slane %v194, 0
    %v206 = vunpack.c.l.b16 %v186
    %v207 = vunpack.c.l.b16 %v187
    %v208 = vunpack.c.l.b16 %v188
    %v209 = vunpack.c.l.b16 %v189
    %v210 = vunpack.c.l.b16 %v190
    %v211 = vunpack.c.l.b16 %v191
    %v212 = vunpack.c.l.b16 %v192
    %v213 = vunpack.c.l.b16 %v193
    %v214 = vpack.c.b16 %v207, %v206
    %v215 = vpack.c.b16 %v209, %v208
    %v216 = vpack.c.b16 %v211, %v210
    %v217 = vpack.c.b16 %v213, %v212
    %v223 = vsel %vm156, %v185, 0
    %225 = vmatpush.bf16.msra.mxu0 0
    %226 = vmatpush.bf16.msra.mxu0 0
    %227 = vmatpush.bf16.msra.mxu0 0
    %228 = vmatpush.bf16.msra.mxu0 0
    %229 = vmatpush.bf16.msra.mxu0 %v217
    %230 = vmatpush.bf16.msra.mxu0 %v216
    %231 = vmatpush.bf16.msra.mxu0 %v215
    %232 = vmatpush.bf16.msra.mxu0 %v214
    %233 = vmatmul.bf16.gmra.mxu0 %v223
    %v234 = vpop.f32.mrf.mxu0
    %v235 = vadd.f32 %v196, %v234
    %v236 = vpop.f32.mrf.mxu0
    %237 = vdwg.mxu0
    %v238 = vtanh.pop %v235
    %v239 = vmul.f32 %v238, 3.5
    %v240 = vadd.f32 %v239, -1.5
    %v241 = vlaneseq
    %v242 = vand.u32 %v241, 127
    %vm243 = vcmp.lt.s32.totalorder %v242, 4
    %v244 = vsel %vm243, %v235, %v240
    %vm245 = vcmask 64512
    %246 = vst.msk [vmem:[%s7] sm:$0xff] %vm245, %v244
    // Predicated region
    $region46: #{actor_forward.1} parent=1 // pred_check
      _
    $region47: #{actor_forward.1} parent=1 // pred_check_branch
      %248 = sbr.rel (0) target = $region49
    $region48: #{actor_forward.1} parent=1 // pred_region
      _
    $region49: #{actor_forward.1} parent=1 // pred_fallthru
      _
    // Predicated region
    $region50: #{actor_forward.1} parent=1 // pred_check
      _
    $region51: #{actor_forward.1} parent=1 // pred_check_branch
      %250 = sbr.rel (0) target = $region53
    $region52: #{actor_forward.1} parent=1 // pred_region
      _
    $region53: #{actor_forward.1} parent=1 // pred_fallthru
      _
    %251 = vsyncpa [#allocation3], 1
    %252 = vsyncpa [#allocation5], 1
    %253 = vsyncpa [#allocation8], 1

</llo_original>
